<compile_context>
chip_gen: v6e
topology: v6e:2x2x1
jax: 0.10.0
libtpu: 0.0.40
codegen_flags: <defaults>
</compile_context>

<pallas_src>
import jax
import jax.numpy as jnp
from jax import lax
from jax.experimental import pallas as pl
from jax.experimental.pallas import tpu as pltpu


def _fusion_gate_kernel(llm_ref, gnn_ref, wl_ref, wg_ref, wcl_ref, wcg_ref,
                        vec_ref, out_ref):
    llm = llm_ref[...]                                    # (TB, L) bf16
    gnn = gnn_ref[...]                                    # (TB, G) bf16

    # ---- Four INDEPENDENT MXU matmuls (f32 accumulation) ---------------------
    llm_p = jnp.dot(llm, wl_ref[...], preferred_element_type=jnp.float32)    # (TB, F)
    gnn_p = jnp.dot(gnn, wg_ref[...], preferred_element_type=jnp.float32)    # (TB, F)
    h = (jnp.dot(llm, wcl_ref[...], preferred_element_type=jnp.float32)
         + jnp.dot(gnn, wcg_ref[...], preferred_element_type=jnp.float32))   # (TB, F) (padded H)
    h = jnp.maximum(h, 0.0)                               # ReLU; gate Dropout = identity (eval)

    # ---- Packed small vectors -------------------------------------------------
    g2 = vec_ref[0:1, :]                                  # (1, F) gate layer-2 row (zero-padded)
    gamma = vec_ref[1:2, :]                               # (1, F)
    beta = vec_ref[2:3, :]                                # (1, F)

    # N=1 output "matmul" -> VPU broadcast-multiply + lane reduction (zero pad -> 0 contrib).
    logit = jnp.sum(h * g2, axis=1, keepdims=True)        # (TB, 1)
    g = jax.nn.sigmoid(logit)                             # (TB, 1)

    # ---- Gated fusion ----------------------------------------------------------
    fused = g * llm_p + (1.0 - g) * gnn_p                 # (TB, F) f32

    # ---- LayerNorm (two-pass variance, gamma folded into the rsqrt scale) ------
    mean = jnp.mean(fused, axis=1, keepdims=True)
    centered = fused - mean
    var = jnp.mean(centered * centered, axis=1, keepdims=True)
    out_ref[...] = centered * (lax.rsqrt(var + 1e-5) * gamma) + beta   # Dropout = identity


def _pick_tile(batch):
    """Batch tile: two even tiles for small B (v7x megacore), capped at 256 rows
    (fills the 256-row v6e/v7x MXU); multiples of 16 for bf16 sublane packing."""
    if batch <= 16:
        return 16
    half = -(-batch // 2)                 # ceil(B / 2)
    half = -(-half // 16) * 16            # round up to multiple of 16
    return min(half, 256)


def pack_params(raw):
    """One-time precompute: fold projections into gate layer-1, cast MXU operands to
    bf16, pad gate hidden dim to F, pack (g2_row, gamma, beta) into one (3, F) array.

    raw: w_llm_t (L,F), w_gnn_t (G,F), w_g1 (2F,H), w_g2 (H,1), gamma (F,), beta (F,)  [f32]
    """
    F = raw["w_llm_t"].shape[1]
    H = raw["w_g2"].shape[0]

    w_g1_llm = raw["w_g1"][:F, :]                       # acts on llm_proj
    w_g1_gnn = raw["w_g1"][F:, :]                       # acts on gnn_proj
    # h = relu(lp @ g1_llm + gp @ g1_gnn) = relu(llm @ (Wl @ g1_llm) + gnn @ (Wg @ g1_gnn))
    wc_llm = raw["w_llm_t"] @ w_g1_llm                  # (L, H) f32
    wc_gnn = raw["w_gnn_t"] @ w_g1_gnn                  # (G, H) f32

    # Zero-pad hidden dim H -> F: lane-dense h; padded columns give relu(0)=0 and are
    # multiplied by zero-padded g2 entries, so they contribute nothing to the logit.
    wc_llm = jnp.pad(wc_llm, ((0, 0), (0, F - H)))
    wc_gnn = jnp.pad(wc_gnn, ((0, 0), (0, F - H)))
    g2_row = jnp.pad(raw["w_g2"].T, ((0, 0), (0, F - H)))          # (1, F)

    vecs = jnp.concatenate([g2_row, raw["gamma"][None, :], raw["beta"][None, :]], axis=0)

    return {
        "w_llm_t": raw["w_llm_t"].astype(jnp.bfloat16),   # (L, F) bf16 MXU operand
        "w_gnn_t": raw["w_gnn_t"].astype(jnp.bfloat16),   # (G, F) bf16 MXU operand
        "wc_llm": wc_llm.astype(jnp.bfloat16),            # (L, F) bf16 MXU operand
        "wc_gnn": wc_gnn.astype(jnp.bfloat16),            # (G, F) bf16 MXU operand
        "vecs": vecs.astype(jnp.float32),                 # (3, F) f32
    }


def fusion_gate_forward(llm_emb, gnn_emb, kp, *, tb=None):
    B, L = llm_emb.shape
    G = gnn_emb.shape[1]
    F = kp["w_llm_t"].shape[1]

    # bf16 MXU operands; all accumulation / elementwise math stays f32 in the kernel.
    llm = llm_emb.astype(jnp.bfloat16)
    gnn = gnn_emb.astype(jnp.bfloat16)

    if tb is None:
        tb = _pick_tile(B)
    nb = pl.cdiv(B, tb)
    Bp = nb * tb
    if Bp != B:
        llm = jnp.pad(llm, ((0, Bp - B), (0, 0)))
        gnn = jnp.pad(gnn, ((0, Bp - B), (0, 0)))

    # Batch-tiled activations; weights full & resident across grid steps (index_map -> (0,0)).
    in_specs = [
        pl.BlockSpec((tb, L), lambda i: (i, 0)),   # llm activations (bf16)
        pl.BlockSpec((tb, G), lambda i: (i, 0)),   # gnn activations (bf16)
        pl.BlockSpec((L, F), lambda i: (0, 0)),    # w_llm_t
        pl.BlockSpec((G, F), lambda i: (0, 0)),    # w_gnn_t
        pl.BlockSpec((L, F), lambda i: (0, 0)),    # folded gate weight, llm half
        pl.BlockSpec((G, F), lambda i: (0, 0)),    # folded gate weight, gnn half
        pl.BlockSpec((3, F), lambda i: (0, 0)),    # packed [g2_row; gamma; beta]
    ]
    out_spec = pl.BlockSpec((tb, F), lambda i: (i, 0))

    out = pl.pallas_call(
        _fusion_gate_kernel,
        out_shape=jax.ShapeDtypeStruct((Bp, F), jnp.float32),
        grid_spec=pltpu.PrefetchScalarGridSpec(
            num_scalar_prefetch=0,
            grid=(nb,),
            in_specs=in_specs,
            out_specs=out_spec,
        ),
        compiler_params=pltpu.CompilerParams(
            dimension_semantics=("parallel",),     # batch tiles shard across v7x TensorCores
        ),
    )(llm, gnn, kp["w_llm_t"], kp["w_gnn_t"], kp["wc_llm"], kp["wc_gnn"], kp["vecs"])

    return out[:B] if Bp != B else out


def init_params(key, llm_dim, gnn_dim, fusion_dim):
    """Deterministic init mimicking nn.Linear default U(-1/sqrt(fan_in), 1/sqrt(fan_in))."""
    ks = jax.random.split(key, 4)
    half = fusion_dim // 2

    def lin(k, fan_in, fan_out):
        bound = 1.0 / jnp.sqrt(jnp.float32(fan_in))
        return jax.random.uniform(k, (fan_in, fan_out), jnp.float32, -bound, bound)

    return {
        "w_llm_t": lin(ks[0], llm_dim, fusion_dim),        # (L, F)  = W_llm.T
        "w_gnn_t": lin(ks[1], gnn_dim, fusion_dim),        # (G, F)  = W_gnn.T
        "w_g1": lin(ks[2], fusion_dim * 2, half),          # (2F, H) = W_g1.T
        "w_g2": lin(ks[3], half, 1),                       # (H, 1)  = W_g2.T
        "gamma": jnp.ones((fusion_dim,), jnp.float32),
        "beta": jnp.zeros((fusion_dim,), jnp.float32),
    }


if __name__ == "__main__":
    B, LLM_DIM, GNN_DIM, FUSION_DIM = 64, 128, 64, 128

    key = jax.random.PRNGKey(0)
    k_llm, k_gnn, k_par = jax.random.split(key, 3)

    llm_emb = jax.random.normal(k_llm, (B, LLM_DIM), jnp.float32)
    # gnn input arrives in bf16; the module's .to(float32) is realized as bf16 MXU
    # operands with f32 accumulation inside the kernel.
    gnn_emb = jax.random.normal(k_gnn, (B, GNN_DIM), jnp.float32).astype(jnp.bfloat16)

    raw_params = init_params(k_par, LLM_DIM, GNN_DIM, FUSION_DIM)
    kp = pack_params(raw_params)                  # one-time precompute (fold + pack + bf16)

    out = fusion_gate_forward(llm_emb, gnn_emb, kp)
    jax.block_until_ready(out)

    # Pure-JAX reference using the SAME bf16-rounded MXU operands (f32 accumulation).
    llm_q = llm_emb.astype(jnp.bfloat16).astype(jnp.float32)
    gnn_q = gnn_emb.astype(jnp.float32)
    wl_q = kp["w_llm_t"].astype(jnp.float32)
    wg_q = kp["w_gnn_t"].astype(jnp.float32)
    wcl_q = kp["wc_llm"].astype(jnp.float32)
    wcg_q = kp["wc_gnn"].astype(jnp.float32)
    g2_q, gamma_q, beta_q = kp["vecs"][0:1], kp["vecs"][1:2], kp["vecs"][2:3]

    lp = llm_q @ wl_q
    gp = gnn_q @ wg_q
    h = jnp.maximum(llm_q @ wcl_q + gnn_q @ wcg_q, 0.0)
    gw = jax.nn.sigmoid(jnp.sum(h * g2_q, axis=1, keepdims=True))
    fused = gw * lp + (1.0 - gw) * gp
    mu = fused.mean(axis=1, keepdims=True)
    var = ((fused - mu) ** 2).mean(axis=1, keepdims=True)
    ref = (fused - mu) / jnp.sqrt(var + 1e-5) * gamma_q + beta_q

    assert jnp.allclose(out, ref, atol=2e-3, rtol=2e-3), "mismatch vs reference"
    print("KERNEL_OK")
</pallas_src>

<mosaic_0001>
module attributes {stable_mosaic.version = 11 : i64} {
  func.func @_fusion_gate_kernel(%arg0: i32, %arg1: memref<32x128xbf16, #tpu.memory_space<vmem>>, %arg2: memref<32x64xbf16, #tpu.memory_space<vmem>>, %arg3: memref<128x128xbf16, #tpu.memory_space<vmem>>, %arg4: memref<64x128xbf16, #tpu.memory_space<vmem>>, %arg5: memref<128x128xbf16, #tpu.memory_space<vmem>>, %arg6: memref<64x128xbf16, #tpu.memory_space<vmem>>, %arg7: memref<3x128xf32, #tpu.memory_space<vmem>>, %arg8: memref<32x128xf32, #tpu.memory_space<vmem>>) attributes {dimension_semantics = [#tpu.dimension_semantics<parallel>], iteration_bounds = array<i64: 2>, scalar_prefetch = 0 : i64, scratch_operands = 0 : i64, tpu.core_type = #tpu.core_type<tc>, window_params = [{transform_indices = @transform_0, window_bounds = array<i64: 32, 128>}, {transform_indices = @transform_1, window_bounds = array<i64: 32, 64>}, {pipeline_mode = #tpu.pipeline_mode<synchronous>, transform_indices = @transform_2, window_bounds = array<i64: 128, 128>}, {pipeline_mode = #tpu.pipeline_mode<synchronous>, transform_indices = @transform_3, window_bounds = array<i64: 64, 128>}, {pipeline_mode = #tpu.pipeline_mode<synchronous>, transform_indices = @transform_4, window_bounds = array<i64: 128, 128>}, {pipeline_mode = #tpu.pipeline_mode<synchronous>, transform_indices = @transform_5, window_bounds = array<i64: 64, 128>}, {pipeline_mode = #tpu.pipeline_mode<synchronous>, transform_indices = @transform_6, window_bounds = array<i64: 3, 128>}, {transform_indices = @transform_7, window_bounds = array<i64: 32, 128>}]} {
    %c0 = arith.constant 0 : index
    %c0_0 = arith.constant 0 : index
    %0 = vector.load %arg1[%c0, %c0_0] : memref<32x128xbf16, #tpu.memory_space<vmem>>, vector<32x128xbf16>
    %c0_1 = arith.constant 0 : index
    %c0_2 = arith.constant 0 : index
    %1 = vector.load %arg2[%c0_1, %c0_2] : memref<32x64xbf16, #tpu.memory_space<vmem>>, vector<32x64xbf16>
    %c0_3 = arith.constant 0 : index
    %c0_4 = arith.constant 0 : index
    %2 = vector.load %arg3[%c0_3, %c0_4] : memref<128x128xbf16, #tpu.memory_space<vmem>>, vector<128x128xbf16>
    %cst = arith.constant dense<0.000000e+00> : vector<32x128xf32>
    %3 = tpu.matmul %0, %2, %cst {dimension_numbers = #tpu.dot_dimension_numbers<[1], [0], [0], [1], [0, 0, 1, 1], [], []>} : vector<32x128xbf16>, vector<128x128xbf16>, vector<32x128xf32> -> vector<32x128xf32>
    %c0_5 = arith.constant 0 : index
    %c0_6 = arith.constant 0 : index
    %4 = vector.load %arg4[%c0_5, %c0_6] : memref<64x128xbf16, #tpu.memory_space<vmem>>, vector<64x128xbf16>
    %cst_7 = arith.constant dense<0.000000e+00> : vector<32x128xf32>
    %5 = tpu.matmul %1, %4, %cst_7 {dimension_numbers = #tpu.dot_dimension_numbers<[1], [0], [0], [1], [0, 0, 1, 1], [], []>} : vector<32x64xbf16>, vector<64x128xbf16>, vector<32x128xf32> -> vector<32x128xf32>
    %c0_8 = arith.constant 0 : index
    %c0_9 = arith.constant 0 : index
    %6 = vector.load %arg5[%c0_8, %c0_9] : memref<128x128xbf16, #tpu.memory_space<vmem>>, vector<128x128xbf16>
    %cst_10 = arith.constant dense<0.000000e+00> : vector<32x128xf32>
    %7 = tpu.matmul %0, %6, %cst_10 {dimension_numbers = #tpu.dot_dimension_numbers<[1], [0], [0], [1], [0, 0, 1, 1], [], []>} : vector<32x128xbf16>, vector<128x128xbf16>, vector<32x128xf32> -> vector<32x128xf32>
    %c0_11 = arith.constant 0 : index
    %c0_12 = arith.constant 0 : index
    %8 = vector.load %arg6[%c0_11, %c0_12] : memref<64x128xbf16, #tpu.memory_space<vmem>>, vector<64x128xbf16>
    %cst_13 = arith.constant dense<0.000000e+00> : vector<32x128xf32>
    %9 = tpu.matmul %1, %8, %cst_13 {dimension_numbers = #tpu.dot_dimension_numbers<[1], [0], [0], [1], [0, 0, 1, 1], [], []>} : vector<32x64xbf16>, vector<64x128xbf16>, vector<32x128xf32> -> vector<32x128xf32>
    %10 = arith.addf %7, %9 : vector<32x128xf32>
    %cst_14 = arith.constant 0.000000e+00 : f32
    %11 = vector.broadcast %cst_14 : f32 to vector<32x128xf32>
    %12 = arith.maximumf %10, %11 : vector<32x128xf32>
    %c0_15 = arith.constant 0 : index
    %c0_16 = arith.constant 0 : index
    %13 = vector.load %arg7[%c0_15, %c0_16] : memref<3x128xf32, #tpu.memory_space<vmem>>, vector<1x128xf32>
    %c1 = arith.constant 1 : index
    %c0_17 = arith.constant 0 : index
    %14 = vector.load %arg7[%c1, %c0_17] : memref<3x128xf32, #tpu.memory_space<vmem>>, vector<1x128xf32>
    %c2 = arith.constant 2 : index
    %c0_18 = arith.constant 0 : index
    %15 = vector.load %arg7[%c2, %c0_18] : memref<3x128xf32, #tpu.memory_space<vmem>>, vector<1x128xf32>
    %16 = vector.broadcast %13 : vector<1x128xf32> to vector<32x128xf32>
    %17 = arith.mulf %12, %16 : vector<32x128xf32>
    %cst_19 = arith.constant dense<0.000000e+00> : vector<32xf32>
    %18 = vector.multi_reduction <add>, %17, %cst_19 [1] : vector<32x128xf32> to vector<32xf32>
    %19 = vector.shape_cast %18 : vector<32xf32> to vector<32x1xf32>
    %20 = arith.negf %19 : vector<32x1xf32>
    %21 = math.exp %20 : vector<32x1xf32>
    %cst_20 = arith.constant 1.000000e+00 : f32
    %22 = vector.broadcast %cst_20 : f32 to vector<32x1xf32>
    %23 = arith.addf %22, %21 : vector<32x1xf32>
    %24 = arith.divf %22, %23 : vector<32x1xf32>
    %25 = vector.broadcast %24 : vector<32x1xf32> to vector<32x128xf32>
    %26 = arith.mulf %25, %3 : vector<32x128xf32>
    %cst_21 = arith.constant 1.000000e+00 : f32
    %27 = vector.broadcast %cst_21 : f32 to vector<32x1xf32>
    %28 = arith.subf %27, %24 : vector<32x1xf32>
    %29 = vector.broadcast %28 : vector<32x1xf32> to vector<32x128xf32>
    %30 = arith.mulf %29, %5 : vector<32x128xf32>
    %31 = arith.addf %26, %30 : vector<32x128xf32>
    %cst_22 = arith.constant dense<0.000000e+00> : vector<32xf32>
    %32 = vector.multi_reduction <add>, %31, %cst_22 [1] : vector<32x128xf32> to vector<32xf32>
    %33 = vector.shape_cast %32 : vector<32xf32> to vector<32x1xf32>
    %cst_23 = arith.constant 1.280000e+02 : f32
    %34 = vector.broadcast %cst_23 : f32 to vector<32x1xf32>
    %35 = arith.divf %33, %34 : vector<32x1xf32>
    %36 = vector.broadcast %35 : vector<32x1xf32> to vector<32x128xf32>
    %37 = arith.subf %31, %36 : vector<32x128xf32>
    %38 = arith.mulf %37, %37 : vector<32x128xf32>
    %cst_24 = arith.constant dense<0.000000e+00> : vector<32xf32>
    %39 = vector.multi_reduction <add>, %38, %cst_24 [1] : vector<32x128xf32> to vector<32xf32>
    %40 = vector.shape_cast %39 : vector<32xf32> to vector<32x1xf32>
    %cst_25 = arith.constant 1.280000e+02 : f32
    %41 = vector.broadcast %cst_25 : f32 to vector<32x1xf32>
    %42 = arith.divf %40, %41 : vector<32x1xf32>
    %cst_26 = arith.constant 9.99999974E-6 : f32
    %43 = vector.broadcast %cst_26 : f32 to vector<32x1xf32>
    %44 = arith.addf %42, %43 : vector<32x1xf32>
    %45 = math.rsqrt %44 : vector<32x1xf32>
    %46 = vector.broadcast %45 : vector<32x1xf32> to vector<32x128xf32>
    %47 = vector.broadcast %14 : vector<1x128xf32> to vector<32x128xf32>
    %48 = arith.mulf %46, %47 : vector<32x128xf32>
    %49 = arith.mulf %37, %48 : vector<32x128xf32>
    %50 = vector.broadcast %15 : vector<1x128xf32> to vector<32x128xf32>
    %51 = arith.addf %49, %50 : vector<32x128xf32>
    %c0_27 = arith.constant 0 : index
    %c0_28 = arith.constant 0 : index
    %52 = vector.load %arg8[%c0_27, %c0_28] : memref<32x128xf32, #tpu.memory_space<vmem>>, vector<32x128xf32>
    tpu.vector_store %arg8[%c0_27, %c0_28], %51 {strides = array<i32>} : memref<32x128xf32, #tpu.memory_space<vmem>>, vector<32x128xf32>,
    return
  }
  func.func @transform_0(%arg0: i32) -> (i32, i32) {
    %c0_i32 = arith.constant 0 : i32
    %c0_i32_0 = arith.constant 0 : i32
    return %arg0, %c0_i32 : i32, i32
  }
  func.func @transform_1(%arg0: i32) -> (i32, i32) {
    %c0_i32 = arith.constant 0 : i32
    %c0_i32_0 = arith.constant 0 : i32
    return %arg0, %c0_i32 : i32, i32
  }
  func.func @transform_2(%arg0: i32) -> (i32, i32) {
    %c0_i32 = arith.constant 0 : i32
    %c0_i32_0 = arith.constant 0 : i32
    %c0_i32_1 = arith.constant 0 : i32
    return %c0_i32, %c0_i32_0 : i32, i32
  }
  func.func @transform_3(%arg0: i32) -> (i32, i32) {
    %c0_i32 = arith.constant 0 : i32
    %c0_i32_0 = arith.constant 0 : i32
    %c0_i32_1 = arith.constant 0 : i32
    return %c0_i32, %c0_i32_0 : i32, i32
  }
  func.func @transform_4(%arg0: i32) -> (i32, i32) {
    %c0_i32 = arith.constant 0 : i32
    %c0_i32_0 = arith.constant 0 : i32
    %c0_i32_1 = arith.constant 0 : i32
    return %c0_i32, %c0_i32_0 : i32, i32
  }
  func.func @transform_5(%arg0: i32) -> (i32, i32) {
    %c0_i32 = arith.constant 0 : i32
    %c0_i32_0 = arith.constant 0 : i32
    %c0_i32_1 = arith.constant 0 : i32
    return %c0_i32, %c0_i32_0 : i32, i32
  }
  func.func @transform_6(%arg0: i32) -> (i32, i32) {
    %c0_i32 = arith.constant 0 : i32
    %c0_i32_0 = arith.constant 0 : i32
    %c0_i32_1 = arith.constant 0 : i32
    return %c0_i32, %c0_i32_0 : i32, i32
  }
  func.func @transform_7(%arg0: i32) -> (i32, i32) {
    %c0_i32 = arith.constant 0 : i32
    %c0_i32_0 = arith.constant 0 : i32
    return %arg0, %c0_i32 : i32, i32
  }
}

</mosaic_0001>

<llo_original>
// kernel: tpu_custom_call.1
$region0: #{tpu_custom_call.1}
  #allocation0 [shape = 'u32[]', space=smem, size = 0x4, offset = 0x4, fixed_abs, tag = 'smem constant byte address 0x4 - core index']
  #allocation1 [shape = 'u32[144,128]{1,0:T(1,128)}', space=vmem, size = 0x12000, scoped, tag = 'internal scratch']
  %s0 = inlined_call_operand.hbm [shape: bf16[64,128], index: 0, kind: input, shape index: {}]
  %s1 = inlined_call_operand.hbm [shape: bf16[64,64], index: 1, kind: input, shape index: {}]
  %s2 = inlined_call_operand.hbm [shape: bf16[128,128], index: 2, kind: input, shape index: {}]
  %s3 = inlined_call_operand.hbm [shape: bf16[64,128], index: 3, kind: input, shape index: {}]
  %s4 = inlined_call_operand.hbm [shape: bf16[128,128], index: 4, kind: input, shape index: {}]
  %s5 = inlined_call_operand.hbm [shape: bf16[64,128], index: 5, kind: input, shape index: {}]
  %s6 = inlined_call_operand.vmem [shape: f32[3,128], index: 6, kind: input, shape index: {}]
  %s7 = inlined_call_operand.hbm [shape: f32[64,128], index: 7, kind: output, shape index: {}]
  %s8 = sld [smem:[#allocation0]]
  $region85: #{tpu_custom_call.1} parent=0
    _
  %s10 = ssub.s32 1, %s8
  %s11 = scalar_select 0, %s10, %s8
  $region1: #{tpu_custom_call.1} parent=0
    #allocation2 [shape = 'u8[16384]{0}', space=vmem, size = 0x4000, scoped, tag = 'input window, operand 0']
    #allocation3 [shape = 's32[2]{0}', space=sflag, size = 0x8, scoped, tag = 'scoped memory for tpu_custom_call.1']
    #allocation4 [shape = 's32[2]{0}', space=sflag, size = 0x8, scoped, tag = 'scoped memory for tpu_custom_call.1']
    #allocation5 [shape = 'u8[16384]{0}', space=vmem, size = 0x4000, scoped, tag = 'input window, operand 1']
    #allocation6 [shape = 's32[2]{0}', space=sflag, size = 0x8, scoped, tag = 'scoped memory for tpu_custom_call.1']
    #allocation7 [shape = 'u8[32768]{0}', space=vmem, size = 0x8000, scoped, tag = 'input window, operand 2, single buffered']
    #allocation8 [shape = 'u8[16384]{0}', space=vmem, size = 0x4000, scoped, tag = 'input window, operand 3, single buffered']
    #allocation9 [shape = 's32[1]{0}', space=sflag, size = 0x4, scoped, tag = 'scoped memory for tpu_custom_call.1']
    #allocation10 [shape = 'u8[32768]{0}', space=vmem, size = 0x8000, scoped, tag = 'input window, operand 4, single buffered']
    #allocation11 [shape = 'u8[16384]{0}', space=vmem, size = 0x4000, scoped, tag = 'input window, operand 5, single buffered']
    #allocation12 [shape = 's32[1]{0}', space=sflag, size = 0x4, scoped, tag = 'scoped memory for tpu_custom_call.1']
    #allocation13 [shape = 'u8[32768]{0}', space=vmem, size = 0x8000, scoped, tag = 'output window, operand 0']
    %12 = vsyncpa [#allocation3], 0
    %s13 = scalar_lea.sflag [#allocation3], 1
    %14 = vsyncpa %s13, 0
    %15 = vsyncpa [#allocation6], 0
    %s16 = scalar_lea.sflag [#allocation6], 1
    %17 = vsyncpa %s16, 0
    %18 = vsyncpa [#allocation9], 0
    %19 = vsyncpa [#allocation12], 0
    %20 = vsyncpa [#allocation4], 0
    %s21 = scalar_lea.sflag [#allocation4], 1
    %22 = vsyncpa %s21, 0
    loop: start=0, step=1, limit=4
    $region2: #{tpu_custom_call.1} parent=1 // loop_pre_header
      _
    $region3: #{tpu_custom_call.1} parent=1 // loop_header
      %s24 = sphi 0, %s28
      %p25 = scmp.ge.s32.totalorder %s24, 4
      %s34 = sphi 0, %s36
      %s37 = sphi 0, %s34
      %s38 = sphi 0, %s37
      %s54 = sphi 0, %s38
      %s60 = sphi 0, %s62
      %s63 = sphi 0, %s60
      %s64 = sphi 0, %s63
      %s80 = sphi 0, %s64
      %s84 = sphi 0, %s84
      %s86 = sphi 0, %s84
      %s87 = sphi 0, %s86
      %s101 = sphi 0, %s87
      %s105 = sphi 0, %s105
      %s107 = sphi 0, %s105
      %s108 = sphi 0, %s107
      %s122 = sphi 0, %s108
      %s126 = sphi 0, %s126
      %s128 = sphi 0, %s126
      %s129 = sphi 0, %s128
      %s143 = sphi 0, %s129
      %s147 = sphi 0, %s147
      %s149 = sphi 0, %s147
      %s150 = sphi 0, %s149
      %s164 = sphi 0, %s150
      %s168 = sphi 0, %s168
      %s170 = sphi 0, %s168
      %s171 = sphi 0, %s170
      %s185 = sphi 0, %s171
      %s191 = sphi 0, %s193
      %s194 = sphi 0, %s191
      %s195 = sphi 0, %s194
      %s211 = sphi 0, %s195
    $region4: #{tpu_custom_call.1} parent=1 // loop_header_branch
      %27 = sbr.rel (%p25) target = $region8
    $region5: #{tpu_custom_call.1} parent=1 // loop_body
      %s29 = ssub.s32 %s24, 1
      %s30 = ssub.s32 %s24, 2
      %s31 = sadd.s32 %s24, 1
      %s32 = ssub.s32 %s24, %s31
      %p33 = scmp.eq.s32.totalorder %s32, 0
      %s35 = sadd.s32 %s34, 1
      %s36 = scalar_select %p33, %s34, %s35
      %p39 = pneg %p33
      %p40 = scmp.eq.s32.totalorder %s24, 1
      %p41 = por %p39, %p40
      %p42 = scmp.ne.s32.totalorder %s34, %s37
      %p43 = scmp.eq.s32.totalorder %s24, 0
      %p44 = por %p42, %p43
      %p45 = scmp.ne.s32.totalorder %s34, %s37
      %p46 = scmp.eq.s32.totalorder %s29, 1
      %p47 = por %p45, %p46
      %p48 = scmp.ne.s32.totalorder %s37, %s38
      %p49 = scmp.eq.s32.totalorder %s29, 0
      %p50 = por %p48, %p49
      %p51 = scmp.ne.s32.totalorder %s37, %s38
      %p52 = scmp.eq.s32.totalorder %s30, 1
      %p53 = por %p51, %p52
      %p55 = scmp.ne.s32.totalorder %s38, %s54
      %p56 = scmp.eq.s32.totalorder %s30, 0
      %p57 = por %p55, %p56
      %s58 = ssub.s32 %s24, %s31
      %p59 = scmp.eq.s32.totalorder %s58, 0
      %s61 = sadd.s32 %s60, 1
      %s62 = scalar_select %p59, %s60, %s61
      %p65 = pneg %p59
      %p66 = scmp.eq.s32.totalorder %s24, 1
      %p67 = por %p65, %p66
      %p68 = scmp.ne.s32.totalorder %s60, %s63
      %p69 = scmp.eq.s32.totalorder %s24, 0
      %p70 = por %p68, %p69
      %p71 = scmp.ne.s32.totalorder %s60, %s63
      %p72 = scmp.eq.s32.totalorder %s29, 1
      %p73 = por %p71, %p72
      %p74 = scmp.ne.s32.totalorder %s63, %s64
      %p75 = scmp.eq.s32.totalorder %s29, 0
      %p76 = por %p74, %p75
      %p77 = scmp.ne.s32.totalorder %s63, %s64
      %p78 = scmp.eq.s32.totalorder %s30, 1
      %p79 = por %p77, %p78
      %p81 = scmp.ne.s32.totalorder %s64, %s80
      %p82 = scmp.eq.s32.totalorder %s30, 0
      %p83 = por %p81, %p82
      %s85 = sadd.s32 %s84, 1
      %p88 = scmp.eq.s32.totalorder %s24, 1
      %p89 = scmp.ne.s32.totalorder %s84, %s86
      %p90 = scmp.eq.s32.totalorder %s24, 0
      %p91 = por %p89, %p90
      %p92 = scmp.ne.s32.totalorder %s84, %s86
      %p93 = scmp.eq.s32.totalorder %s29, 1
      %p94 = por %p92, %p93
      %p95 = scmp.ne.s32.totalorder %s86, %s87
      %p96 = scmp.eq.s32.totalorder %s29, 0
      %p97 = por %p95, %p96
      %p98 = scmp.ne.s32.totalorder %s86, %s87
      %p99 = scmp.eq.s32.totalorder %s30, 1
      %p100 = por %p98, %p99
      %p102 = scmp.ne.s32.totalorder %s87, %s101
      %p103 = scmp.eq.s32.totalorder %s30, 0
      %p104 = por %p102, %p103
      %s106 = sadd.s32 %s105, 1
      %p109 = scmp.eq.s32.totalorder %s24, 1
      %p110 = scmp.ne.s32.totalorder %s105, %s107
      %p111 = scmp.eq.s32.totalorder %s24, 0
      %p112 = por %p110, %p111
      %p113 = scmp.ne.s32.totalorder %s105, %s107
      %p114 = scmp.eq.s32.totalorder %s29, 1
      %p115 = por %p113, %p114
      %p116 = scmp.ne.s32.totalorder %s107, %s108
      %p117 = scmp.eq.s32.totalorder %s29, 0
      %p118 = por %p116, %p117
      %p119 = scmp.ne.s32.totalorder %s107, %s108
      %p120 = scmp.eq.s32.totalorder %s30, 1
      %p121 = por %p119, %p120
      %p123 = scmp.ne.s32.totalorder %s108, %s122
      %p124 = scmp.eq.s32.totalorder %s30, 0
      %p125 = por %p123, %p124
      %s127 = sadd.s32 %s126, 1
      %p130 = scmp.eq.s32.totalorder %s24, 1
      %p131 = scmp.ne.s32.totalorder %s126, %s128
      %p132 = scmp.eq.s32.totalorder %s24, 0
      %p133 = por %p131, %p132
      %p134 = scmp.ne.s32.totalorder %s126, %s128
      %p135 = scmp.eq.s32.totalorder %s29, 1
      %p136 = por %p134, %p135
      %p137 = scmp.ne.s32.totalorder %s128, %s129
      %p138 = scmp.eq.s32.totalorder %s29, 0
      %p139 = por %p137, %p138
      %p140 = scmp.ne.s32.totalorder %s128, %s129
      %p141 = scmp.eq.s32.totalorder %s30, 1
      %p142 = por %p140, %p141
      %p144 = scmp.ne.s32.totalorder %s129, %s143
      %p145 = scmp.eq.s32.totalorder %s30, 0
      %p146 = por %p144, %p145
      %s148 = sadd.s32 %s147, 1
      %p151 = scmp.eq.s32.totalorder %s24, 1
      %p152 = scmp.ne.s32.totalorder %s147, %s149
      %p153 = scmp.eq.s32.totalorder %s24, 0
      %p154 = por %p152, %p153
      %p155 = scmp.ne.s32.totalorder %s147, %s149
      %p156 = scmp.eq.s32.totalorder %s29, 1
      %p157 = por %p155, %p156
      %p158 = scmp.ne.s32.totalorder %s149, %s150
      %p159 = scmp.eq.s32.totalorder %s29, 0
      %p160 = por %p158, %p159
      %p161 = scmp.ne.s32.totalorder %s149, %s150
      %p162 = scmp.eq.s32.totalorder %s30, 1
      %p163 = por %p161, %p162
      %p165 = scmp.ne.s32.totalorder %s150, %s164
      %p166 = scmp.eq.s32.totalorder %s30, 0
      %p167 = por %p165, %p166
      %s169 = sadd.s32 %s168, 1
      %p172 = scmp.eq.s32.totalorder %s24, 1
      %p173 = scmp.ne.s32.totalorder %s168, %s170
      %p174 = scmp.eq.s32.totalorder %s24, 0
      %p175 = por %p173, %p174
      %p176 = scmp.ne.s32.totalorder %s168, %s170
      %p177 = scmp.eq.s32.totalorder %s29, 1
      %p178 = por %p176, %p177
      %p179 = scmp.ne.s32.totalorder %s170, %s171
      %p180 = scmp.eq.s32.totalorder %s29, 0
      %p181 = por %p179, %p180
      %p182 = scmp.ne.s32.totalorder %s170, %s171
      %p183 = scmp.eq.s32.totalorder %s30, 1
      %p184 = por %p182, %p183
      %p186 = scmp.ne.s32.totalorder %s171, %s185
      %p187 = scmp.eq.s32.totalorder %s30, 0
      %p188 = por %p186, %p187
      %s189 = ssub.s32 %s24, %s31
      %p190 = scmp.eq.s32.totalorder %s189, 0
      %s192 = sadd.s32 %s191, 1
      %s193 = scalar_select %p190, %s191, %s192
      %p196 = pneg %p190
      %p197 = scmp.eq.s32.totalorder %s24, 1
      %p198 = por %p196, %p197
      %p199 = scmp.ne.s32.totalorder %s191, %s194
      %p200 = scmp.eq.s32.totalorder %s24, 0
      %p201 = por %p199, %p200
      %p202 = scmp.ne.s32.totalorder %s191, %s194
      %p203 = scmp.eq.s32.totalorder %s29, 1
      %p204 = por %p202, %p203
      %p205 = scmp.ne.s32.totalorder %s194, %s195
      %p206 = scmp.eq.s32.totalorder %s29, 0
      %p207 = por %p205, %p206
      %p208 = scmp.ne.s32.totalorder %s194, %s195
      %p209 = scmp.eq.s32.totalorder %s30, 1
      %p210 = por %p208, %p209
      %p212 = scmp.ne.s32.totalorder %s195, %s211
      %p213 = scmp.eq.s32.totalorder %s30, 0
      %p214 = por %p212, %p213
      %p215 = scmp.le.s32.totalorder 1, %s24
      %p216 = scmp.lt.s32.totalorder %s24, 3
      %p217 = pnand %p215, %p216
      %p218 = pneg %p217
      // Predicated region
      $region9: #{tpu_custom_call.1} parent=5 // pred_check
        _
      $region10: #{tpu_custom_call.1} parent=5 // pred_check_branch
        %220 = sbr.rel (%p217) target = $region12
      $region11: #{tpu_custom_call.1} parent=5 // pred_region
        %s221 = ssub.s32 %s24, 1
        // Predicated region
        $region13: #{tpu_custom_call.1} parent=11 // pred_check
          %p222 = pneg %p97
        $region14: #{tpu_custom_call.1} parent=11 // pred_check_branch
          %224 = sbr.rel (%p222) target = $region16
        $region15: #{tpu_custom_call.1} parent=11 // pred_region
          %s226 = ssub.s32 1024, 1024
          %227 = vsyncadd [#allocation6], %s226
          %s228 = sshll.u32 [#allocation7], 4
          %s229 = int_to_ptr.vmem [resolvable:$true] %s228
          %234 = dma.hbm_to_vmem [thread:$0]  %s2, 1024, %s229, [#allocation6], 64, 64, 4
        $region16: #{tpu_custom_call.1} parent=11 // pred_fallthru
          _
        // Predicated region
        $region17: #{tpu_custom_call.1} parent=11 // pred_check
          %p235 = pneg %p118
        $region18: #{tpu_custom_call.1} parent=11 // pred_check_branch
          %237 = sbr.rel (%p235) target = $region20
        $region19: #{tpu_custom_call.1} parent=11 // pred_region
          %s239 = ssub.s32 512, 512
          %240 = vsyncadd [#allocation9], %s239
          %s241 = sshll.u32 [#allocation8], 4
          %s242 = int_to_ptr.vmem [resolvable:$true] %s241
          %247 = dma.hbm_to_vmem [thread:$0]  %s3, 512, %s242, [#allocation9], 64, 64, 4
        $region20: #{tpu_custom_call.1} parent=11 // pred_fallthru
          _
        // Predicated region
        $region21: #{tpu_custom_call.1} parent=11 // pred_check
          %p248 = pneg %p139
        $region22: #{tpu_custom_call.1} parent=11 // pred_check_branch
          %250 = sbr.rel (%p248) target = $region24
        $region23: #{tpu_custom_call.1} parent=11 // pred_region
          %s252 = ssub.s32 1024, 1024
          %253 = vsyncadd [#allocation9], %s252
          %s254 = sshll.u32 [#allocation10], 4
          %s255 = int_to_ptr.vmem [resolvable:$true] %s254
          %260 = dma.hbm_to_vmem [thread:$0]  %s4, 1024, %s255, [#allocation9], 64, 64, 4
        $region24: #{tpu_custom_call.1} parent=11 // pred_fallthru
          _
        // Predicated region
        $region25: #{tpu_custom_call.1} parent=11 // pred_check
          %p261 = pneg %p160
        $region26: #{tpu_custom_call.1} parent=11 // pred_check_branch
          %263 = sbr.rel (%p261) target = $region28
        $region27: #{tpu_custom_call.1} parent=11 // pred_region
          %s265 = ssub.s32 512, 512
          %266 = vsyncadd [#allocation12], %s265
          %s267 = sshll.u32 [#allocation11], 4
          %s268 = int_to_ptr.vmem [resolvable:$true] %s267
          %273 = dma.hbm_to_vmem [thread:$0]  %s5, 512, %s268, [#allocation12], 64, 64, 4
        $region28: #{tpu_custom_call.1} parent=11 // pred_fallthru
          _
        // Predicated region
        $region29: #{tpu_custom_call.1} parent=11 // pred_check
          %p274 = pneg %p181
        $region30: #{tpu_custom_call.1} parent=11 // pred_check_branch
          %276 = sbr.rel (%p274) target = $region32
        $region31: #{tpu_custom_call.1} parent=11 // pred_region
          _
        $region32: #{tpu_custom_call.1} parent=11 // pred_fallthru
          _
      $region12: #{tpu_custom_call.1} parent=5 // pred_fallthru
        _
      %p277 = scmp.lt.s32.totalorder %s24, 2
      // Predicated region
      $region33: #{tpu_custom_call.1} parent=5 // pred_check
        %p278 = pneg %p277
      $region34: #{tpu_custom_call.1} parent=5 // pred_check_branch
        %280 = sbr.rel (%p278) target = $region36
      $region35: #{tpu_custom_call.1} parent=5 // pred_region
        // Predicated region
        $region37: #{tpu_custom_call.1} parent=35 // pred_check
          %p281 = pneg %p44
        $region38: #{tpu_custom_call.1} parent=35 // pred_check_branch
          %283 = sbr.rel (%p281) target = $region40
        $region39: #{tpu_custom_call.1} parent=35 // pred_region
          %s284 = sand.u32 %s34, 1
          %s285 = scalar_lea.sflag [#allocation3], %s284
          %s286 = sand.u32 %s34, 1
          %s287 = smul.addr %s286, 16
          %s288 = scalar_lea.vmem [#allocation2], %s287
          %s289 = smul.u32 4, %s24
          %s291 = ssub.s32 256, 256
          %292 = vsyncadd %s285, %s291
          %s293 = smul.addr %s289, 64
          %s294 = scalar_lea.hbm %s0, %s293
          %s295 = sshll.u32 %s288, 4
          %s296 = int_to_ptr.vmem [resolvable:$true] %s295
          %301 = dma.hbm_to_vmem [thread:$0]  %s294, 256, %s296, %s285, 64, 64, 4
        $region40: #{tpu_custom_call.1} parent=35 // pred_fallthru
          _
        // Predicated region
        $region41: #{tpu_custom_call.1} parent=35 // pred_check
          %p302 = pneg %p70
        $region42: #{tpu_custom_call.1} parent=35 // pred_check_branch
          %304 = sbr.rel (%p302) target = $region44
        $region43: #{tpu_custom_call.1} parent=35 // pred_region
          %s305 = sand.u32 %s24, 1
          %s306 = scalar_lea.sflag [#allocation6], %s305
          %s307 = sand.u32 %s60, 1
          %s308 = smul.addr %s307, 16
          %s309 = scalar_lea.vmem [#allocation5], %s308
          %s310 = smul.u32 4, %s24
          %s312 = ssub.s32 256, 256
          %313 = vsyncadd %s306, %s312
          %s314 = smul.addr %s310, 64
          %s315 = scalar_lea.hbm %s1, %s314
          %s316 = sshll.u32 %s309, 4
          %s317 = int_to_ptr.vmem [resolvable:$true] %s316
          %322 = dma.hbm_to_vmem [thread:$0]  %s315, 256, %s317, %s306, 64, 64, 4
        $region44: #{tpu_custom_call.1} parent=35 // pred_fallthru
          _
      $region36: #{tpu_custom_call.1} parent=5 // pred_fallthru
        _
      %p323 = scmp.le.s32.totalorder 1, %s24
      %p324 = scmp.lt.s32.totalorder %s24, 3
      %p325 = pnand %p323, %p324
      %p326 = pneg %p325
      // Predicated region
      $region45: #{tpu_custom_call.1} parent=5 // pred_check
        _
      $region46: #{tpu_custom_call.1} parent=5 // pred_check_branch
        %328 = sbr.rel (%p325) target = $region48
      $region47: #{tpu_custom_call.1} parent=5 // pred_region
        %s329 = ssub.s32 %s24, 1
        %s330 = sand.u32 %s37, 1
        %s331 = scalar_lea.sflag [#allocation3], %s330
        %s332 = sand.u32 %s37, 1
        %s333 = smul.addr %s332, 16
        %s334 = scalar_lea.vmem [#allocation2], %s333
        // Predicated region
        $region49: #{tpu_custom_call.1} parent=47 // pred_check
          %p335 = pneg %p50
        $region50: #{tpu_custom_call.1} parent=47 // pred_check_branch
          %337 = sbr.rel (%p335) target = $region52
        $region51: #{tpu_custom_call.1} parent=47 // pred_region
          %338 = dma.done %s331, 256
        $region52: #{tpu_custom_call.1} parent=47 // pred_fallthru
          _
        %s339 = sand.u32 %s29, 1
        %s340 = scalar_lea.sflag [#allocation6], %s339
        %s341 = sand.u32 %s63, 1
        %s342 = smul.addr %s341, 16
        %s343 = scalar_lea.vmem [#allocation5], %s342
        // Predicated region
        $region53: #{tpu_custom_call.1} parent=47 // pred_check
          %p344 = pneg %p76
        $region54: #{tpu_custom_call.1} parent=47 // pred_check_branch
          %346 = sbr.rel (%p344) target = $region56
        $region55: #{tpu_custom_call.1} parent=47 // pred_region
          %347 = dma.done %s340, 256
        $region56: #{tpu_custom_call.1} parent=47 // pred_fallthru
          _
        // Predicated region
        $region57: #{tpu_custom_call.1} parent=47 // pred_check
          %p348 = pneg %p97
        $region58: #{tpu_custom_call.1} parent=47 // pred_check_branch
          %350 = sbr.rel (%p348) target = $region60
        $region59: #{tpu_custom_call.1} parent=47 // pred_region
          %351 = dma.done [#allocation6], 1024
        $region60: #{tpu_custom_call.1} parent=47 // pred_fallthru
          _
        // Predicated region
        $region61: #{tpu_custom_call.1} parent=47 // pred_check
          %p352 = pneg %p118
        $region62: #{tpu_custom_call.1} parent=47 // pred_check_branch
          %354 = sbr.rel (%p352) target = $region64
        $region63: #{tpu_custom_call.1} parent=47 // pred_region
          %355 = dma.done [#allocation9], 512
        $region64: #{tpu_custom_call.1} parent=47 // pred_fallthru
          _
        // Predicated region
        $region65: #{tpu_custom_call.1} parent=47 // pred_check
          %p356 = pneg %p139
        $region66: #{tpu_custom_call.1} parent=47 // pred_check_branch
          %358 = sbr.rel (%p356) target = $region68
        $region67: #{tpu_custom_call.1} parent=47 // pred_region
          %359 = dma.done [#allocation9], 1024
        $region68: #{tpu_custom_call.1} parent=47 // pred_fallthru
          _
        // Predicated region
        $region69: #{tpu_custom_call.1} parent=47 // pred_check
          %p360 = pneg %p160
        $region70: #{tpu_custom_call.1} parent=47 // pred_check_branch
          %362 = sbr.rel (%p360) target = $region72
        $region71: #{tpu_custom_call.1} parent=47 // pred_region
          %363 = dma.done [#allocation12], 512
        $region72: #{tpu_custom_call.1} parent=47 // pred_fallthru
          _
        %s364 = sand.u32 %s37, 1
        %s365 = scalar_lea.sflag [#allocation3], %s364
        %s366 = sand.u32 %s37, 1
        %s367 = smul.addr %s366, 16
        %s368 = scalar_lea.vmem [#allocation2], %s367
        %p369 = pneg %p50
        %p370 = pneg %p47
        %s371 = sand.u32 %s29, 1
        %s372 = scalar_lea.sflag [#allocation6], %s371
        %s373 = sand.u32 %s63, 1
        %s374 = smul.addr %s373, 16
        %s375 = scalar_lea.vmem [#allocation5], %s374
        %p376 = pneg %p76
        %p377 = pneg %p73
        %p378 = pneg %p97
        %p379 = pneg %p94
        %p380 = pneg %p118
        %p381 = pneg %p115
        %p382 = pneg %p139
        %p383 = pneg %p136
        %p384 = pneg %p160
        %p385 = pneg %p157
        %p386 = pneg %p181
        %p387 = pneg %p178
        %p388 = pneg %p207
        %p389 = pneg %p204
        %s390 = sand.u32 %s194, 1
        %s391 = scalar_lea.sflag [#allocation4], %s390
        %s392 = sand.u32 %s194, 1
        %s393 = smul.addr %s392, 32
        %s394 = scalar_lea.vmem [#allocation13], %s393
        %s395 = smul.u32 4, %s29
        %s396 = smul.u32 4, %s29
        %s397 = smul.u32 4, %s29
        %v399 = vld [vmem:[%s334] sm:$0xf]
        %v400 = vld [vmem:[%s334 + $0x4] sm:$0xf]
        %v401 = vld [vmem:[%s334 + $0x8] sm:$0xf]
        %v402 = vld [vmem:[%s334 + $0xc] sm:$0xf]
        %v403 = vld [vmem:[%s343] sm:$0xf]
        %v404 = vld [vmem:[%s343 + $0x4] sm:$0xf]
        %v405 = vld [vmem:[%s343 + $0x8] sm:$0xf]
        %v406 = vld [vmem:[%s343 + $0xc] sm:$0xf]
        %v407 = vld [vmem:[#allocation7] sm:$0xf]
        %v408 = vld [vmem:[#allocation7 + $0x4] sm:$0xf]
        %v409 = vld [vmem:[#allocation7 + $0x8] sm:$0xf]
        %v410 = vld [vmem:[#allocation7 + $0xc] sm:$0xf]
        %v411 = vld [vmem:[#allocation7 + $0x10] sm:$0xf]
        %v412 = vld [vmem:[#allocation7 + $0x14] sm:$0xf]
        %v413 = vld [vmem:[#allocation7 + $0x18] sm:$0xf]
        %v414 = vld [vmem:[#allocation7 + $0x1c] sm:$0xf]
        %v415 = vld [vmem:[#allocation7 + $0x20] sm:$0xf]
        %v416 = vld [vmem:[#allocation7 + $0x24] sm:$0xf]
        %v417 = vld [vmem:[#allocation7 + $0x28] sm:$0xf]
        %v418 = vld [vmem:[#allocation7 + $0x2c] sm:$0xf]
        %v419 = vld [vmem:[#allocation7 + $0x30] sm:$0xf]
        %v420 = vld [vmem:[#allocation7 + $0x34] sm:$0xf]
        %v421 = vld [vmem:[#allocation7 + $0x38] sm:$0xf]
        %v422 = vld [vmem:[#allocation7 + $0x3c] sm:$0xf]
        %v427 = vunpack.c.l.b16 %v399
        %v428 = vunpack.c.l.b16 %v400
        %v429 = vunpack.c.l.b16 %v401
        %v430 = vunpack.c.l.b16 %v402
        %v431 = vpack.c.b16 %v428, %v427
        %v432 = vpack.c.b16 %v430, %v429
        %v451 = vunpack.c.l.b16 %v407
        %v452 = vunpack.c.l.b16 %v408
        %v453 = vunpack.c.l.b16 %v409
        %v454 = vunpack.c.l.b16 %v410
        %v455 = vunpack.c.l.b16 %v411
        %v456 = vunpack.c.l.b16 %v412
        %v457 = vunpack.c.l.b16 %v413
        %v458 = vunpack.c.l.b16 %v414
        %v459 = vunpack.c.l.b16 %v415
        %v460 = vunpack.c.l.b16 %v416
        %v461 = vunpack.c.l.b16 %v417
        %v462 = vunpack.c.l.b16 %v418
        %v463 = vunpack.c.l.b16 %v419
        %v464 = vunpack.c.l.b16 %v420
        %v465 = vunpack.c.l.b16 %v421
        %v466 = vunpack.c.l.b16 %v422
        %v467 = vpack.c.b16 %v452, %v451
        %v468 = vpack.c.b16 %v454, %v453
        %v469 = vpack.c.b16 %v456, %v455
        %v470 = vpack.c.b16 %v458, %v457
        %v471 = vpack.c.b16 %v460, %v459
        %v472 = vpack.c.b16 %v462, %v461
        %v473 = vpack.c.b16 %v464, %v463
        %v474 = vpack.c.b16 %v466, %v465
        %483 = vmatprep.subr.bf16.mxu0 0
        %484 = vmatpush1.bf16.msra.mxu0 %v474
        %485 = vmatprep.subr.bf16.mxu0 0
        %486 = vmatpush1.bf16.msra.mxu0 %v473
        %487 = vmatprep.subr.bf16.mxu0 0
        %488 = vmatpush1.bf16.msra.mxu0 %v472
        %489 = vmatprep.subr.bf16.mxu0 0
        %490 = vmatpush1.bf16.msra.mxu0 %v471
        %491 = vmatprep.subr.bf16.mxu0 0
        %492 = vmatpush1.bf16.msra.mxu0 %v470
        %493 = vmatprep.subr.bf16.mxu0 0
        %494 = vmatpush1.bf16.msra.mxu0 %v469
        %495 = vmatprep.subr.bf16.mxu0 0
        %496 = vmatpush1.bf16.msra.mxu0 %v468
        %497 = vmatprep.subr.bf16.mxu0 0
        %498 = vmatpush1.bf16.msra.mxu0 %v467
        %499 = vmatprep.subr.bf16.mxu0 0
        %500 = vmatpush2.bf16.msra.mxu0 0
        %501 = vmatprep.subr.bf16.mxu0 0
        %502 = vmatpush2.bf16.msra.mxu0 0
        %503 = vmatprep.subr.bf16.mxu0 0
        %504 = vmatpush2.bf16.msra.mxu0 0
        %505 = vmatprep.subr.bf16.mxu0 0
        %506 = vmatpush2.bf16.msra.mxu0 0
        %507 = vmatprep.subr.bf16.mxu0 0
        %508 = vmatpush2.bf16.msra.mxu0 0
        %509 = vmatprep.subr.bf16.mxu0 0
        %510 = vmatpush2.bf16.msra.mxu0 0
        %511 = vmatprep.subr.bf16.mxu0 0
        %512 = vmatpush2.bf16.msra.mxu0 0
        %513 = vmatprep.subr.bf16.mxu0 0
        %514 = vmatpush2.bf16.msra.mxu0 0
        %515 = vmatprep.mubr.bf16.mxu0 0
        %516 = vmatmul.mubr.bf16.gmra.mxu0 %v431
        %v517 = vpop.f32.mrf.mxu0
        %v518 = vadd.f32 0.0, %v517
        %v519 = vpop.f32.mrf.mxu0
        %v520 = vpop.f32.mrf.mxu0
        %v521 = vadd.f32 0.0, %v520
        %v522 = vpop.f32.mrf.mxu0
        %523 = vmatprep.mubr.bf16.mxu0 0
        %524 = vmatmul.mubr.bf16.gmra.mxu0 %v432
        %v525 = vpop.f32.mrf.mxu0
        %v526 = vadd.f32 0.0, %v525
        %v527 = vpop.f32.mrf.mxu0
        %v528 = vpop.f32.mrf.mxu0
        %v529 = vadd.f32 0.0, %v528
        %v530 = vpop.f32.mrf.mxu0
        %531 = vdwg.mxu0
        %v532 = vld [vmem:[#allocation8] sm:$0xf]
        %v533 = vld [vmem:[#allocation8 + $0x4] sm:$0xf]
        %v534 = vld [vmem:[#allocation8 + $0x8] sm:$0xf]
        %v535 = vld [vmem:[#allocation8 + $0xc] sm:$0xf]
        %v536 = vld [vmem:[#allocation8 + $0x10] sm:$0xf]
        %v537 = vld [vmem:[#allocation8 + $0x14] sm:$0xf]
        %v538 = vld [vmem:[#allocation8 + $0x18] sm:$0xf]
        %v539 = vld [vmem:[#allocation8 + $0x1c] sm:$0xf]
        %v544 = vunpack.c.l.b16 %v403
        %v545 = vunpack.c.l.b16 %v404
        %v546 = vunpack.c.l.b16 %v405
        %v547 = vunpack.c.l.b16 %v406
        %v548 = vpack.c.b16 %v545, %v544
        %v549 = vpack.c.b16 %v547, %v546
        %v558 = vunpack.c.l.b16 %v532
        %v559 = vunpack.c.l.b16 %v533
        %v560 = vunpack.c.l.b16 %v534
        %v561 = vunpack.c.l.b16 %v535
        %v562 = vunpack.c.l.b16 %v536
        %v563 = vunpack.c.l.b16 %v537
        %v564 = vunpack.c.l.b16 %v538
        %v565 = vunpack.c.l.b16 %v539
        %v566 = vpack.c.b16 %v559, %v558
        %v567 = vpack.c.b16 %v561, %v560
        %v568 = vpack.c.b16 %v563, %v562
        %v569 = vpack.c.b16 %v565, %v564
        %vm574 = vcmask 523264
        %v576 = vsel %vm574, %v548, 0
        %v579 = vsel %vm574, %v549, 0
        %581 = vmatprep.subr.bf16.mxu0 0
        %582 = vmatpush1.bf16.msra.mxu0 0
        %583 = vmatprep.subr.bf16.mxu0 0
        %584 = vmatpush1.bf16.msra.mxu0 0
        %585 = vmatprep.subr.bf16.mxu0 0
        %586 = vmatpush1.bf16.msra.mxu0 0
        %587 = vmatprep.subr.bf16.mxu0 0
        %588 = vmatpush1.bf16.msra.mxu0 0
        %589 = vmatprep.subr.bf16.mxu0 0
        %590 = vmatpush1.bf16.msra.mxu0 %v569
        %591 = vmatprep.subr.bf16.mxu0 0
        %592 = vmatpush1.bf16.msra.mxu0 %v568
        %593 = vmatprep.subr.bf16.mxu0 0
        %594 = vmatpush1.bf16.msra.mxu0 %v567
        %595 = vmatprep.subr.bf16.mxu0 0
        %596 = vmatpush1.bf16.msra.mxu0 %v566
        %597 = vmatprep.subr.bf16.mxu0 0
        %598 = vmatpush2.bf16.msra.mxu0 0
        %599 = vmatprep.subr.bf16.mxu0 0
        %600 = vmatpush2.bf16.msra.mxu0 0
        %601 = vmatprep.subr.bf16.mxu0 0
        %602 = vmatpush2.bf16.msra.mxu0 0
        %603 = vmatprep.subr.bf16.mxu0 0
        %604 = vmatpush2.bf16.msra.mxu0 0
        %605 = vmatprep.subr.bf16.mxu0 0
        %606 = vmatpush2.bf16.msra.mxu0 0
        %607 = vmatprep.subr.bf16.mxu0 0
        %608 = vmatpush2.bf16.msra.mxu0 0
        %609 = vmatprep.subr.bf16.mxu0 0
        %610 = vmatpush2.bf16.msra.mxu0 0
        %611 = vmatprep.subr.bf16.mxu0 0
        %612 = vmatpush2.bf16.msra.mxu0 0
        %613 = vmatprep.mubr.bf16.mxu0 0
        %614 = vmatmul.mubr.bf16.gmra.mxu0 %v576
        %v615 = vpop.f32.mrf.mxu0
        %v616 = vadd.f32 0.0, %v615
        %v617 = vpop.f32.mrf.mxu0
        %v618 = vpop.f32.mrf.mxu0
        %v619 = vadd.f32 0.0, %v618
        %v620 = vpop.f32.mrf.mxu0
        %621 = vmatprep.mubr.bf16.mxu0 0
        %622 = vmatmul.mubr.bf16.gmra.mxu0 %v579
        %v623 = vpop.f32.mrf.mxu0
        %v624 = vadd.f32 0.0, %v623
        %v625 = vpop.f32.mrf.mxu0
        %v626 = vpop.f32.mrf.mxu0
        %v627 = vadd.f32 0.0, %v626
        %v628 = vpop.f32.mrf.mxu0
        %629 = vdwg.mxu0
        %v630 = vld [vmem:[#allocation10] sm:$0xf]
        %v631 = vld [vmem:[#allocation10 + $0x4] sm:$0xf]
        %v632 = vld [vmem:[#allocation10 + $0x8] sm:$0xf]
        %v633 = vld [vmem:[#allocation10 + $0xc] sm:$0xf]
        %v634 = vld [vmem:[#allocation10 + $0x10] sm:$0xf]
        %v635 = vld [vmem:[#allocation10 + $0x14] sm:$0xf]
        %v636 = vld [vmem:[#allocation10 + $0x18] sm:$0xf]
        %v637 = vld [vmem:[#allocation10 + $0x1c] sm:$0xf]
        %v638 = vld [vmem:[#allocation10 + $0x20] sm:$0xf]
        %v639 = vld [vmem:[#allocation10 + $0x24] sm:$0xf]
        %v640 = vld [vmem:[#allocation10 + $0x28] sm:$0xf]
        %v641 = vld [vmem:[#allocation10 + $0x2c] sm:$0xf]
        %v642 = vld [vmem:[#allocation10 + $0x30] sm:$0xf]
        %v643 = vld [vmem:[#allocation10 + $0x34] sm:$0xf]
        %v644 = vld [vmem:[#allocation10 + $0x38] sm:$0xf]
        %v645 = vld [vmem:[#allocation10 + $0x3c] sm:$0xf]
        %v646 = vld [vmem:[#allocation11] sm:$0xf]
        %v647 = vld [vmem:[#allocation11 + $0x4] sm:$0xf]
        %v648 = vld [vmem:[#allocation11 + $0x8] sm:$0xf]
        %v649 = vld [vmem:[#allocation11 + $0xc] sm:$0xf]
        %v650 = vld [vmem:[#allocation11 + $0x10] sm:$0xf]
        %v651 = vld [vmem:[#allocation11 + $0x14] sm:$0xf]
        %v652 = vld [vmem:[#allocation11 + $0x18] sm:$0xf]
        %v653 = vld [vmem:[#allocation11 + $0x1c] sm:$0xf]
        %v662 = vunpack.c.l.b16 %v646
        %v663 = vunpack.c.l.b16 %v647
        %v664 = vunpack.c.l.b16 %v648
        %v665 = vunpack.c.l.b16 %v649
        %v666 = vunpack.c.l.b16 %v650
        %v667 = vunpack.c.l.b16 %v651
        %v668 = vunpack.c.l.b16 %v652
        %v669 = vunpack.c.l.b16 %v653
        %v670 = vpack.c.b16 %v663, %v662
        %v671 = vpack.c.b16 %v665, %v664
        %v672 = vpack.c.b16 %v667, %v666
        %v673 = vpack.c.b16 %v669, %v668
        %678 = vmatprep.subr.bf16.mxu0 0
        %679 = vmatpush1.bf16.msra.mxu0 0
        %680 = vmatprep.subr.bf16.mxu0 0
        %681 = vmatpush1.bf16.msra.mxu0 0
        %682 = vmatprep.subr.bf16.mxu0 0
        %683 = vmatpush1.bf16.msra.mxu0 0
        %684 = vmatprep.subr.bf16.mxu0 0
        %685 = vmatpush1.bf16.msra.mxu0 0
        %686 = vmatprep.subr.bf16.mxu0 0
        %687 = vmatpush1.bf16.msra.mxu0 %v673
        %688 = vmatprep.subr.bf16.mxu0 0
        %689 = vmatpush1.bf16.msra.mxu0 %v672
        %690 = vmatprep.subr.bf16.mxu0 0
        %691 = vmatpush1.bf16.msra.mxu0 %v671
        %692 = vmatprep.subr.bf16.mxu0 0
        %693 = vmatpush1.bf16.msra.mxu0 %v670
        %694 = vmatprep.subr.bf16.mxu0 0
        %695 = vmatpush2.bf16.msra.mxu0 0
        %696 = vmatprep.subr.bf16.mxu0 0
        %697 = vmatpush2.bf16.msra.mxu0 0
        %698 = vmatprep.subr.bf16.mxu0 0
        %699 = vmatpush2.bf16.msra.mxu0 0
        %700 = vmatprep.subr.bf16.mxu0 0
        %701 = vmatpush2.bf16.msra.mxu0 0
        %702 = vmatprep.subr.bf16.mxu0 0
        %703 = vmatpush2.bf16.msra.mxu0 0
        %704 = vmatprep.subr.bf16.mxu0 0
        %705 = vmatpush2.bf16.msra.mxu0 0
        %706 = vmatprep.subr.bf16.mxu0 0
        %707 = vmatpush2.bf16.msra.mxu0 0
        %708 = vmatprep.subr.bf16.mxu0 0
        %709 = vmatpush2.bf16.msra.mxu0 0
        %710 = vmatprep.mubr.bf16.mxu0 0
        %711 = vmatmul.mubr.bf16.gmra.mxu0 %v576
        %v712 = vpop.f32.mrf.mxu0
        %v713 = vadd.f32 0.0, %v712
        %v714 = vpop.f32.mrf.mxu0
        %v715 = vpop.f32.mrf.mxu0
        %v716 = vadd.f32 0.0, %v715
        %v717 = vpop.f32.mrf.mxu0
        %718 = vmatprep.mubr.bf16.mxu0 0
        %719 = vmatmul.mubr.bf16.gmra.mxu0 %v579
        %v720 = vpop.f32.mrf.mxu0
        %v721 = vadd.f32 0.0, %v720
        %v722 = vpop.f32.mrf.mxu0
        %v723 = vpop.f32.mrf.mxu0
        %v724 = vadd.f32 0.0, %v723
        %v725 = vpop.f32.mrf.mxu0
        %726 = vdwg.mxu0
        %v743 = vunpack.c.l.b16 %v630
        %v744 = vunpack.c.l.b16 %v631
        %v745 = vunpack.c.l.b16 %v632
        %v746 = vunpack.c.l.b16 %v633
        %v747 = vunpack.c.l.b16 %v634
        %v748 = vunpack.c.l.b16 %v635
        %v749 = vunpack.c.l.b16 %v636
        %v750 = vunpack.c.l.b16 %v637
        %v751 = vunpack.c.l.b16 %v638
        %v752 = vunpack.c.l.b16 %v639
        %v753 = vunpack.c.l.b16 %v640
        %v754 = vunpack.c.l.b16 %v641
        %v755 = vunpack.c.l.b16 %v642
        %v756 = vunpack.c.l.b16 %v643
        %v757 = vunpack.c.l.b16 %v644
        %v758 = vunpack.c.l.b16 %v645
        %v759 = vpack.c.b16 %v744, %v743
        %v760 = vpack.c.b16 %v746, %v745
        %v761 = vpack.c.b16 %v748, %v747
        %v762 = vpack.c.b16 %v750, %v749
        %v763 = vpack.c.b16 %v752, %v751
        %v764 = vpack.c.b16 %v754, %v753
        %v765 = vpack.c.b16 %v756, %v755
        %v766 = vpack.c.b16 %v758, %v757
        %775 = vmatprep.subr.bf16.mxu0 0
        %776 = vmatpush1.bf16.msra.mxu0 %v766
        %777 = vmatprep.subr.bf16.mxu0 0
        %778 = vmatpush1.bf16.msra.mxu0 %v765
        %779 = vmatprep.subr.bf16.mxu0 0
        %780 = vmatpush1.bf16.msra.mxu0 %v764
        %781 = vmatprep.subr.bf16.mxu0 0
        %782 = vmatpush1.bf16.msra.mxu0 %v763
        %783 = vmatprep.subr.bf16.mxu0 0
        %784 = vmatpush1.bf16.msra.mxu0 %v762
        %785 = vmatprep.subr.bf16.mxu0 0
        %786 = vmatpush1.bf16.msra.mxu0 %v761
        %787 = vmatprep.subr.bf16.mxu0 0
        %788 = vmatpush1.bf16.msra.mxu0 %v760
        %789 = vmatprep.subr.bf16.mxu0 0
        %790 = vmatpush1.bf16.msra.mxu0 %v759
        %791 = vmatprep.subr.bf16.mxu0 0
        %792 = vmatpush2.bf16.msra.mxu0 0
        %793 = vmatprep.subr.bf16.mxu0 0
        %794 = vmatpush2.bf16.msra.mxu0 0
        %795 = vmatprep.subr.bf16.mxu0 0
        %796 = vmatpush2.bf16.msra.mxu0 0
        %797 = vmatprep.subr.bf16.mxu0 0
        %798 = vmatpush2.bf16.msra.mxu0 0
        %799 = vmatprep.subr.bf16.mxu0 0
        %800 = vmatpush2.bf16.msra.mxu0 0
        %801 = vmatprep.subr.bf16.mxu0 0
        %802 = vmatpush2.bf16.msra.mxu0 0
        %803 = vmatprep.subr.bf16.mxu0 0
        %804 = vmatpush2.bf16.msra.mxu0 0
        %805 = vmatprep.subr.bf16.mxu0 0
        %806 = vmatpush2.bf16.msra.mxu0 0
        %807 = vmatprep.mubr.bf16.mxu0 0
        %808 = vmatmul.mubr.bf16.gmra.mxu0 %v431
        %v809 = vpop.f32.mrf.mxu0
        %v810 = vadd.f32 %v713, %v809
        %v811 = vpop.f32.mrf.mxu0
        %v812 = vpop.f32.mrf.mxu0
        %v813 = vadd.f32 %v716, %v812
        %v814 = vpop.f32.mrf.mxu0
        %815 = vmatprep.mubr.bf16.mxu0 0
        %816 = vmatmul.mubr.bf16.gmra.mxu0 %v432
        %v817 = vpop.f32.mrf.mxu0
        %v818 = vadd.f32 %v721, %v817
        %v819 = vpop.f32.mrf.mxu0
        %v820 = vpop.f32.mrf.mxu0
        %v821 = vadd.f32 %v724, %v820
        %v822 = vpop.f32.mrf.mxu0
        %823 = vdwg.mxu0
        %v824 = vmax.f32 %v810, 0.0
        %v825 = vmax.f32 %v813, 0.0
        %v826 = vmax.f32 %v818, 0.0
        %v827 = vmax.f32 %v821, 0.0
        %v828 = vld [vmem:[%s6] sm:$0x1]
        %v829 = vld [vmem:[%s6 + $0x1] sm:$0x1]
        %v830 = vld [vmem:[%s6 + $0x2] sm:$0x1]
        %v831 = vlaneseq
        %v832 = vshrl.u32 %v831, 7
        %v833 = vsub.s32 0, %v832
        %v834 = vrot.slane %v828, %v833
        %v835 = vmul.f32 %v824, %v834
        %v836 = vmul.f32 %v825, %v834
        %v837 = vmul.f32 %v826, %v834
        %v838 = vmul.f32 %v827, %v834
        %839 = vadd.xlane.f32.xlu0 %v835
        %v840 = vpop.xlane.xlu0 %839
        %841 = vadd.xlane.f32.xlu0 %v836
        %v842 = vpop.xlane.xlu0 %841
        %843 = vadd.xlane.f32.xlu0 %v837
        %v844 = vpop.xlane.xlu0 %843
        %845 = vadd.xlane.f32.xlu0 %v838
        %v846 = vpop.xlane.xlu0 %845
        %v847 = vxor.u32 %v840, 2147483648
        %v848 = vxor.u32 %v842, 2147483648
        %v849 = vxor.u32 %v844, 2147483648
        %v850 = vxor.u32 %v846, 2147483648
        %v851 = vmul.f32 %v847, 1.442695
        %v852 = vpow.pop %v851
        %v853 = vmul.f32 %v848, 1.442695
        %v854 = vpow.pop %v853
        %v855 = vmul.f32 %v849, 1.442695
        %v856 = vpow.pop %v855
        %v857 = vmul.f32 %v850, 1.442695
        %v858 = vpow.pop %v857
        %v859 = vadd.f32 %v852, 1.0
        %v860 = vadd.f32 %v854, 1.0
        %v861 = vadd.f32 %v856, 1.0
        %v862 = vadd.f32 %v858, 1.0
        %v863 = vrcp.pop %v859
        %v864 = vmul.f32 1.0, %v863
        %v865 = vrcp.pop %v860
        %v866 = vmul.f32 1.0, %v865
        %v867 = vrcp.pop %v861
        %v868 = vmul.f32 1.0, %v867
        %v869 = vrcp.pop %v862
        %v870 = vmul.f32 1.0, %v869
        %v871 = vmul.f32 %v864, %v518
        %v872 = vmul.f32 %v866, %v521
        %v873 = vmul.f32 %v868, %v526
        %v874 = vmul.f32 %v870, %v529
        %v875 = vsub.f32 1.0, %v864
        %v876 = vsub.f32 1.0, %v866
        %v877 = vsub.f32 1.0, %v868
        %v878 = vsub.f32 1.0, %v870
        %v879 = vmul.f32 %v875, %v616
        %v880 = vmul.f32 %v876, %v619
        %v881 = vmul.f32 %v877, %v624
        %v882 = vmul.f32 %v878, %v627
        %v883 = vadd.f32 %v871, %v879
        %v884 = vadd.f32 %v872, %v880
        %v885 = vadd.f32 %v873, %v881
        %v886 = vadd.f32 %v874, %v882
        %887 = vadd.xlane.f32.xlu0 %v883
        %v888 = vpop.xlane.xlu0 %887
        %889 = vadd.xlane.f32.xlu0 %v884
        %v890 = vpop.xlane.xlu0 %889
        %891 = vadd.xlane.f32.xlu0 %v885
        %v892 = vpop.xlane.xlu0 %891
        %893 = vadd.xlane.f32.xlu0 %v886
        %v894 = vpop.xlane.xlu0 %893
        %v895 = vrcp.pop 128.0
        %v896 = vmul.f32 %v888, %v895
        %v897 = vmul.f32 %v890, %v895
        %v898 = vmul.f32 %v892, %v895
        %v899 = vmul.f32 %v894, %v895
        %v900 = vsub.f32 %v883, %v896
        %v901 = vsub.f32 %v884, %v897
        %v902 = vsub.f32 %v885, %v898
        %v903 = vsub.f32 %v886, %v899
        %v904 = vmul.f32 %v900, %v900
        %v905 = vmul.f32 %v901, %v901
        %v906 = vmul.f32 %v902, %v902
        %v907 = vmul.f32 %v903, %v903
        %908 = vadd.xlane.f32.xlu0 %v904
        %v909 = vpop.xlane.xlu0 %908
        %910 = vadd.xlane.f32.xlu0 %v905
        %v911 = vpop.xlane.xlu0 %910
        %912 = vadd.xlane.f32.xlu0 %v906
        %v913 = vpop.xlane.xlu0 %912
        %914 = vadd.xlane.f32.xlu0 %v907
        %v915 = vpop.xlane.xlu0 %914
        %v916 = vmul.f32 %v909, %v895
        %v917 = vmul.f32 %v911, %v895
        %v918 = vmul.f32 %v913, %v895
        %v919 = vmul.f32 %v915, %v895
        %v920 = vadd.f32 %v916, 1e-05
        %v921 = vadd.f32 %v917, 1e-05
        %v922 = vadd.f32 %v918, 1e-05
        %v923 = vadd.f32 %v919, 1e-05
        %v924 = vrsqrt.pop %v920
        %v925 = vrsqrt.pop %v921
        %v926 = vrsqrt.pop %v922
        %v927 = vrsqrt.pop %v923
        %v928 = vlaneseq
        %v929 = vshrl.u32 %v928, 7
        %v930 = vsub.s32 0, %v929
        %v931 = vrot.slane %v829, %v930
        %v932 = vmul.f32 %v924, %v931
        %v933 = vmul.f32 %v925, %v931
        %v934 = vmul.f32 %v926, %v931
        %v935 = vmul.f32 %v927, %v931
        %v936 = vmul.f32 %v900, %v932
        %v937 = vmul.f32 %v901, %v933
        %v938 = vmul.f32 %v902, %v934
        %v939 = vmul.f32 %v903, %v935
        %v940 = vlaneseq
        %v941 = vshrl.u32 %v940, 7
        %v942 = vsub.s32 0, %v941
        %v943 = vrot.slane %v830, %v942
        %v944 = vadd.f32 %v936, %v943
        %v945 = vadd.f32 %v937, %v943
        %v946 = vadd.f32 %v938, %v943
        %v947 = vadd.f32 %v939, %v943
        %948 = vst [vmem:[%s394] sm:$0xff] %v944
        %949 = vst [vmem:[%s394 + $0x8] sm:$0xff] %v945
        %950 = vst [vmem:[%s394 + $0x10] sm:$0xff] %v946
        %951 = vst [vmem:[%s394 + $0x18] sm:$0xff] %v947
        %s952 = sand.u32 %s194, 1
        %s953 = scalar_lea.sflag [#allocation4], %s952
        %s954 = sand.u32 %s194, 1
        %s955 = smul.addr %s954, 32
        %s956 = scalar_lea.vmem [#allocation13], %s955
        // Predicated region
        $region73: #{tpu_custom_call.1} parent=47 // pred_check
          %p957 = pneg %p204
        $region74: #{tpu_custom_call.1} parent=47 // pred_check_branch
          %959 = sbr.rel (%p957) target = $region76
        $region75: #{tpu_custom_call.1} parent=47 // pred_region
          %s960 = smul.u32 4, %s29
          %s962 = ssub.s32 512, 512
          %963 = vsyncadd %s953, %s962
          %s964 = smul.addr %s960, 128
          %s965 = scalar_lea.hbm %s7, %s964
          %s966 = sshll.u32 %s956, 4
          %s967 = int_to_ptr.vmem [resolvable:$true] %s966
          %972 = dma.vmem_to_hbm [thread:$0]  %s967, 512, %s965, %s953, 128, 128, 8
        $region76: #{tpu_custom_call.1} parent=47 // pred_fallthru
          _
      $region48: #{tpu_custom_call.1} parent=5 // pred_fallthru
        _
      %p973 = scmp.le.s32.totalorder 2, %s24
      // Predicated region
      $region77: #{tpu_custom_call.1} parent=5 // pred_check
        %p974 = pneg %p973
      $region78: #{tpu_custom_call.1} parent=5 // pred_check_branch
        %976 = sbr.rel (%p974) target = $region80
      $region79: #{tpu_custom_call.1} parent=5 // pred_region
        %s977 = ssub.s32 %s24, 2
        // Predicated region
        $region81: #{tpu_custom_call.1} parent=79 // pred_check
          %p978 = pneg %p210
        $region82: #{tpu_custom_call.1} parent=79 // pred_check_branch
          %980 = sbr.rel (%p978) target = $region84
        $region83: #{tpu_custom_call.1} parent=79 // pred_region
          %s981 = sand.u32 %s195, 1
          %s982 = scalar_lea.sflag [#allocation4], %s981
          %s983 = sand.u32 %s195, 1
          %s984 = smul.addr %s983, 32
          %s985 = scalar_lea.vmem [#allocation13], %s984
          %986 = dma.done %s982, 512
        $region84: #{tpu_custom_call.1} parent=79 // pred_fallthru
          _
      $region80: #{tpu_custom_call.1} parent=5 // pred_fallthru
        _
    $region6: #{tpu_custom_call.1} parent=1 // loop_footer
      %s28 = sadd.s32 1, %s24
    $region7: #{tpu_custom_call.1} parent=1 // loop_footer_branch
      %23 = sbr.rel target = $region3
    $region8: #{tpu_custom_call.1} parent=1 // loop_exit
      _
    %987 = vsyncpa [#allocation3], 1
    %s988 = scalar_lea.sflag [#allocation3], 1
    %989 = vsyncpa %s988, 1
    %990 = vsyncpa [#allocation6], 1
    %s991 = scalar_lea.sflag [#allocation6], 1
    %992 = vsyncpa %s991, 1
    %993 = vsyncpa [#allocation9], 1
    %994 = vsyncpa [#allocation12], 1
    %995 = vsyncpa [#allocation4], 1
    %s996 = scalar_lea.sflag [#allocation4], 1
    %997 = vsyncpa %s996, 1

</llo_original>
